<compile_context>
chip_gen: v6e
topology: v6e:2x2x1
jax: 0.10.0
libtpu: 0.0.40
codegen_flags: <defaults>
</compile_context>

<pallas_src>
import math
import functools

import jax
import jax.numpy as jnp
from jax.experimental import pallas as pl
from jax.experimental.pallas import tpu as pltpu

_LN20 = math.log(20.0)


def _encoder_kernel(x_ref, wqkv_ref, bqkv_ref, wo_ref, bo_ref, wf_ref, bf_ref,
                    out_ref, atn_ref,
                    q_sc, k_sc, v_sc, acc_sc, *, d_k, sq_blk):
    qi = pl.program_id(1)
    h = pl.program_id(2)
    last_h = pl.num_programs(2) - 1

    # --- Fused Q|K|V projection for this (batch, head), computed once per batch. ---
    # One lane-dense (S, D) @ (D, 3*d_k) matmul instead of three narrow N=d_k ones,
    # and no broadcast of x over heads.
    @pl.when(qi == 0)
    def _():
        x = x_ref[0]                                               # (S, D) bf16
        qkv = jnp.dot(x, wqkv_ref[0], preferred_element_type=jnp.float32)
        qkv = (qkv + bqkv_ref[0]).astype(q_sc.dtype)               # (S, 3*d_k) bf16
        q_sc[h] = qkv[:, 0 * d_k:1 * d_k]
        k_sc[h] = qkv[:, 1 * d_k:2 * d_k]
        v_sc[h] = qkv[:, 2 * d_k:3 * d_k]

    # --- Attention for this (batch, q-block, head): plain 2D matmuls on the MXU. ---
    q0 = pl.multiple_of(qi * sq_blk, sq_blk)
    q = q_sc[h, pl.ds(q0, sq_blk), :]                              # (SQ, d_k) bf16
    k = k_sc[h]                                                    # (S,  d_k) bf16
    v = v_sc[h]                                                    # (S,  d_k) bf16

    scores = jax.lax.dot_general(                                  # (SQ, S) f32
        q, k, dimension_numbers=(((1,), (1,)), ((), ())),
        preferred_element_type=jnp.float32) * (1.0 / math.sqrt(d_k))

    # logistic(c=1, a=20, b=e) == sigmoid(s - ln 20): EUP path, no overflow-to-inf.
    w = jax.nn.sigmoid(scores - _LN20)                             # f32
    atn_ref[0, 0] = w.astype(atn_ref.dtype)                        # bf16 writeback

    ctx = jnp.dot(w.astype(v.dtype), v,                            # (SQ, d_k) f32
                  preferred_element_type=jnp.float32)

    # --- Output projection: accumulate over the head axis in f32. ---
    # sum_h ctx_h @ Wo[h*d_k:(h+1)*d_k, :] == concat_heads(ctx) @ Wo
    @pl.when(h == 0)
    def _():
        acc_sc[...] = jnp.zeros_like(acc_sc)

    acc_sc[...] += jnp.dot(ctx.astype(wo_ref.dtype), wo_ref[0],
                           preferred_element_type=jnp.float32)     # (SQ, D)
    # TODO(synk): when d_k % 128 == 0 (prod) write ctx into a lane-aligned (SQ, D)
    # concat scratch and do one full-K (SQ, D) @ (D, D) projection instead of the
    # per-head K=d_k accumulation above.

    # --- FeedForward.linear_1 + ReLU once all heads are accumulated. ---
    @pl.when(h == last_h)
    def _():
        attn_out = (acc_sc[...] + bo_ref[...]).astype(wf_ref.dtype)    # (SQ, D)
        ff = jnp.dot(attn_out, wf_ref[...],
                     preferred_element_type=jnp.float32) + bf_ref[...]
        out_ref[0] = jnp.maximum(ff, 0.0).astype(out_ref.dtype)


def encoder_layer(x, params, heads, *, sq_blk=None, compute_dtype=jnp.bfloat16):
    """Pallas TPU implementation of EncoderLayer.forward. Returns (out, attention_map)."""
    B, S, D = x.shape
    assert D % heads == 0
    d_k = D // heads
    if sq_blk is None:
        sq_blk = min(S, 512)        # bounds the resident (SQ, S) score tile (v7x: 64 MiB)
    assert S % sq_blk == 0
    n_q = S // sq_blk
    cd = compute_dtype

    # ---- Wrapper-side layout plumbing (outside the kernel). ----
    def head_cols(w):                               # (D, D) -> (H, D, d_k)
        return jnp.transpose(w.reshape(D, heads, d_k), (1, 0, 2))

    def head_cols_b(b):                             # (1, D) -> (H, 1, d_k)
        return b.reshape(heads, 1, d_k)

    # Per-head fused projection weight: wqkv[h] = [Wq_h | Wk_h | Wv_h]  -> (H, D, 3*d_k)
    wqkv = jnp.concatenate([head_cols(params["wq"]), head_cols(params["wk"]),
                            head_cols(params["wv"])], axis=-1).astype(cd)
    bqkv = jnp.concatenate([head_cols_b(params["bq"]), head_cols_b(params["bk"]),
                            head_cols_b(params["bv"])], axis=-1).astype(cd)
    wo = params["wo"].reshape(heads, d_k, D).astype(cd)    # Wo rows grouped per head
    bo = params["bo"].astype(cd)
    wf = params["wf"].astype(cd)
    bf = params["bf"].astype(cd)
    xc = x.astype(cd)

    # TODO(synk): for real workloads pad S, D, d_k to multiples of 128 (lane dim) so the
    # (.., S) attention-map and (.., D) output stores are unmasked vst; this toy
    # B=2,S=8,D=32 config is correctness-only.
    # TODO(synk): for B=1 serving on v7x, recompute the per-head QKV at h == 0 of every
    # q-block (instead of only qi == 0) so the q-block axis can also be marked
    # "parallel" across the two TensorCores.

    kern = functools.partial(_encoder_kernel, d_k=d_k, sq_blk=sq_blk)
    pinned = dict(pipeline_mode=pl.Buffered(1))     # constant blocks: single-buffered

    grid = (B, n_q, heads)
    in_specs = [
        pl.BlockSpec((1, S, D), lambda b, q, h: (b, 0, 0)),              # x (full seq)
        pl.BlockSpec((1, D, 3 * d_k), lambda b, q, h: (h, 0, 0)),        # fused Wqkv[h]
        pl.BlockSpec((1, 1, 3 * d_k), lambda b, q, h: (h, 0, 0)),        # fused bqkv[h]
        pl.BlockSpec((1, d_k, D), lambda b, q, h: (h, 0, 0)),            # Wo[h]
        pl.BlockSpec((1, D), lambda b, q, h: (0, 0), **pinned),          # bo
        pl.BlockSpec((D, D), lambda b, q, h: (0, 0), **pinned),          # Wf
        pl.BlockSpec((1, D), lambda b, q, h: (0, 0), **pinned),          # bf
    ]
    out_specs = [
        pl.BlockSpec((1, sq_blk, D), lambda b, q, h: (b, q, 0)),         # out
        pl.BlockSpec((1, 1, sq_blk, S), lambda b, q, h: (b, h, q, 0)),   # attention map
    ]
    scratch_shapes = [
        pltpu.VMEM((heads, S, d_k), cd),        # q for all heads of one batch element
        pltpu.VMEM((heads, S, d_k), cd),        # k
        pltpu.VMEM((heads, S, d_k), cd),        # v
        pltpu.VMEM((sq_blk, D), jnp.float32),   # cross-head output-projection accumulator
    ]

    # VMEM budget derived from the actual per-step footprint (review: hard constraint
    # for v7x's 64 MiB).  At the toy size this simply falls back to 32 MiB.
    isz = jnp.dtype(cd).itemsize
    step_bytes = (
        2 * S * D * isz                                        # x block, double-buffered
        + 2 * (D * 3 * d_k + 3 * d_k + d_k * D) * isz          # per-head weights (x2)
        + (2 * D + D * D) * isz                                # pinned bo, bf, Wf (x1)
        + 2 * sq_blk * D * 4 + 2 * sq_blk * S * isz            # out / atn blocks (x2)
        + 3 * heads * S * d_k * isz + sq_blk * D * 4           # scratch
        + 2 * sq_blk * S * 4 + 2 * sq_blk * D * 4)             # live f32 intermediates
    vmem_limit = int(min(max(step_bytes + (8 << 20), 32 << 20), 120 << 20))

    flops = B * (10 * S * D * D + 4 * S * S * D)
    transcendentals = B * heads * S * S
    bytes_accessed = (isz * B * S * D + isz * 5 * D * D
                      + 4 * B * S * D + isz * B * heads * S * S)
    ce = pl.CostEstimate(flops=int(flops), transcendentals=int(transcendentals),
                         bytes_accessed=int(bytes_accessed))

    out, atn = pl.pallas_call(
        kern,
        out_shape=(jax.ShapeDtypeStruct((B, S, D), jnp.float32),
                   jax.ShapeDtypeStruct((B, heads, S, S), cd)),
        grid_spec=pltpu.PrefetchScalarGridSpec(
            num_scalar_prefetch=0, grid=grid,
            in_specs=in_specs, out_specs=out_specs,
            scratch_shapes=scratch_shapes),
        compiler_params=pltpu.CompilerParams(
            dimension_semantics=("parallel", "arbitrary", "arbitrary"),
            vmem_limit_bytes=vmem_limit),
        cost_estimate=ce,
    )(xc, wqkv, bqkv, wo, bo, wf, bf)
    return out, atn


def _reference(x, params, heads):
    """Pure-JAX f32 reference matching the PyTorch forward."""
    B, S, D = x.shape
    d_k = D // heads

    def lin(y, w, b):
        return y @ w + b[0]

    q = lin(x, params["wq"], params["bq"]).reshape(B, S, heads, d_k).transpose(0, 2, 1, 3)
    k = lin(x, params["wk"], params["bk"]).reshape(B, S, heads, d_k).transpose(0, 2, 1, 3)
    v = lin(x, params["wv"], params["bv"]).reshape(B, S, heads, d_k).transpose(0, 2, 1, 3)
    scores = jnp.einsum("bhqd,bhkd->bhqk", q, k) / math.sqrt(d_k)
    w = 1.0 / (1.0 + 20.0 * jnp.exp(-scores))
    attn = jnp.einsum("bhqk,bhkd->bhqd", w, v)
    concat = attn.transpose(0, 2, 1, 3).reshape(B, S, D)
    out = lin(concat, params["wo"], params["bo"])
    ff = jnp.maximum(lin(out, params["wf"], params["bf"]), 0.0)
    return ff, w


if __name__ == "__main__":
    B, S, D, H = 2, 8, 32, 4   # batch, seq, d_model, heads
    key = jax.random.PRNGKey(0)
    keys = jax.random.split(key, 11)

    # Weights stored as (in, out) so the kernel computes x @ W + b
    # (equivalent to torch's y = x @ W_torch^T + b).
    def mk_w(k):
        return jax.random.normal(k, (D, D), jnp.float32) * 0.1

    def mk_b(k):
        return jax.random.normal(k, (1, D), jnp.float32) * 0.05

    params = {
        "wq": mk_w(keys[0]), "bq": mk_b(keys[1]),
        "wk": mk_w(keys[2]), "bk": mk_b(keys[3]),
        "wv": mk_w(keys[4]), "bv": mk_b(keys[5]),
        "wo": mk_w(keys[6]), "bo": mk_b(keys[7]),
        "wf": mk_w(keys[8]), "bf": mk_b(keys[9]),
    }
    x = jax.random.normal(keys[10], (B, S, D), jnp.float32)

    out, atn = encoder_layer(x, params, H)
    out = jax.block_until_ready(out)
    atn = jax.block_until_ready(atn)

    ref_out, ref_atn = _reference(x, params, H)
    assert out.shape == (B, S, D) and atn.shape == (B, H, S, S)
    # bf16 compute with f32 accumulation -> compare at a bf16-appropriate tolerance.
    atn_f32 = atn.astype(jnp.float32)
    assert jnp.allclose(out, ref_out, atol=2e-2, rtol=2e-2), \
        float(jnp.max(jnp.abs(out - ref_out)))
    assert jnp.allclose(atn_f32, ref_atn, atol=2e-2, rtol=2e-2), \
        float(jnp.max(jnp.abs(atn_f32 - ref_atn)))

    print("KERNEL_OK")
</pallas_src>

<mosaic_0001>
module attributes {stable_mosaic.version = 11 : i64} {
  func.func @_encoder_kernel(%arg0: i32, %arg1: i32, %arg2: i32, %arg3: memref<1x8x32xbf16, #tpu.memory_space<vmem>>, %arg4: memref<1x32x24xbf16, #tpu.memory_space<vmem>>, %arg5: memref<1x1x24xbf16, #tpu.memory_space<vmem>>, %arg6: memref<1x8x32xbf16, #tpu.memory_space<vmem>>, %arg7: memref<1x32xbf16, #tpu.memory_space<vmem>>, %arg8: memref<32x32xbf16, #tpu.memory_space<vmem>>, %arg9: memref<1x32xbf16, #tpu.memory_space<vmem>>, %arg10: memref<1x8x32xf32, #tpu.memory_space<vmem>>, %arg11: memref<1x1x8x8xbf16, #tpu.memory_space<vmem>>, %arg12: memref<4x8x8xbf16, #tpu.memory_space<vmem>>, %arg13: memref<4x8x8xbf16, #tpu.memory_space<vmem>>, %arg14: memref<4x8x8xbf16, #tpu.memory_space<vmem>>, %arg15: memref<8x32xf32, #tpu.memory_space<vmem>>) attributes {dimension_semantics = [#tpu.dimension_semantics<parallel>, #tpu.dimension_semantics<arbitrary>, #tpu.dimension_semantics<arbitrary>], iteration_bounds = array<i64: 2, 1, 4>, scalar_prefetch = 0 : i64, scratch_operands = 4 : i64, tpu.core_type = #tpu.core_type<tc>, window_params = [{transform_indices = @transform_0, window_bounds = array<i64: 1, 8, 32>}, {transform_indices = @transform_1, window_bounds = array<i64: 1, 32, 24>}, {transform_indices = @transform_2, window_bounds = array<i64: 1, 1, 24>}, {transform_indices = @transform_3, window_bounds = array<i64: 1, 8, 32>}, {pipeline_mode = #tpu.pipeline_mode<synchronous>, transform_indices = @transform_4, window_bounds = array<i64: 1, 32>}, {pipeline_mode = #tpu.pipeline_mode<synchronous>, transform_indices = @transform_5, window_bounds = array<i64: 32, 32>}, {pipeline_mode = #tpu.pipeline_mode<synchronous>, transform_indices = @transform_6, window_bounds = array<i64: 1, 32>}, {transform_indices = @transform_7, window_bounds = array<i64: 1, 8, 32>}, {transform_indices = @transform_8, window_bounds = array<i64: 1, 1, 8, 8>}]} {
    %c0_i32 = arith.constant 0 : i32
    %0 = arith.cmpi eq, %arg1, %c0_i32 : i32
    %1 = arith.extui %0 : i1 to i32
    %c0_i32_0 = arith.constant 0 : i32
    %2 = arith.cmpi ne, %1, %c0_i32_0 : i32
    scf.if %2 {
      %c0_24 = arith.constant 0 : index
      %c0_25 = arith.constant 0 : index
      %c0_26 = arith.constant 0 : index
      %44 = vector.load %arg3[%c0_24, %c0_25, %c0_26] : memref<1x8x32xbf16, #tpu.memory_space<vmem>>, vector<1x8x32xbf16>
      %45 = vector.shape_cast %44 : vector<1x8x32xbf16> to vector<8x32xbf16>
      %c0_27 = arith.constant 0 : index
      %c0_28 = arith.constant 0 : index
      %c0_29 = arith.constant 0 : index
      %46 = vector.load %arg4[%c0_27, %c0_28, %c0_29] : memref<1x32x24xbf16, #tpu.memory_space<vmem>>, vector<1x32x24xbf16>
      %47 = vector.shape_cast %46 : vector<1x32x24xbf16> to vector<32x24xbf16>
      %cst_30 = arith.constant dense<0.000000e+00> : vector<8x24xf32>
      %48 = tpu.matmul %45, %47, %cst_30 {dimension_numbers = #tpu.dot_dimension_numbers<[1], [0], [0], [1], [0, 0, 1, 1], [], []>} : vector<8x32xbf16>, vector<32x24xbf16>, vector<8x24xf32> -> vector<8x24xf32>
      %c0_31 = arith.constant 0 : index
      %c0_32 = arith.constant 0 : index
      %c0_33 = arith.constant 0 : index
      %49 = vector.load %arg5[%c0_31, %c0_32, %c0_33] : memref<1x1x24xbf16, #tpu.memory_space<vmem>>, vector<1x1x24xbf16>
      %50 = vector.shape_cast %49 : vector<1x1x24xbf16> to vector<1x24xbf16>
      %51 = arith.extf %50 : vector<1x24xbf16> to vector<1x24xf32>
      %52 = vector.broadcast %51 : vector<1x24xf32> to vector<8x24xf32>
      %53 = arith.addf %48, %52 : vector<8x24xf32>
      %54 = arith.truncf %53 : vector<8x24xf32> to vector<8x24xbf16>
      %55 = vector.extract_strided_slice %54 {offsets = [0, 0], sizes = [8, 8], strides = [1, 1]} : vector<8x24xbf16> to vector<8x8xbf16>
      %56 = arith.index_cast %arg2 : i32 to index
      %c0_34 = arith.constant 0 : index
      %c0_35 = arith.constant 0 : index
      %57 = vector.load %arg12[%56, %c0_34, %c0_35] : memref<4x8x8xbf16, #tpu.memory_space<vmem>>, vector<1x8x8xbf16>
      %58 = vector.shape_cast %57 : vector<1x8x8xbf16> to vector<8x8xbf16>
      %59 = vector.shape_cast %55 : vector<8x8xbf16> to vector<1x8x8xbf16>
      tpu.vector_store %arg12[%56, %c0_34, %c0_35], %59 {strides = array<i32>} : memref<4x8x8xbf16, #tpu.memory_space<vmem>>, vector<1x8x8xbf16>,
      %60 = vector.extract_strided_slice %54 {offsets = [0, 8], sizes = [8, 8], strides = [1, 1]} : vector<8x24xbf16> to vector<8x8xbf16>
      %61 = arith.index_cast %arg2 : i32 to index
      %c0_36 = arith.constant 0 : index
      %c0_37 = arith.constant 0 : index
      %62 = vector.load %arg13[%61, %c0_36, %c0_37] : memref<4x8x8xbf16, #tpu.memory_space<vmem>>, vector<1x8x8xbf16>
      %63 = vector.shape_cast %62 : vector<1x8x8xbf16> to vector<8x8xbf16>
      %64 = vector.shape_cast %60 : vector<8x8xbf16> to vector<1x8x8xbf16>
      tpu.vector_store %arg13[%61, %c0_36, %c0_37], %64 {strides = array<i32>} : memref<4x8x8xbf16, #tpu.memory_space<vmem>>, vector<1x8x8xbf16>,
      %65 = vector.extract_strided_slice %54 {offsets = [0, 16], sizes = [8, 8], strides = [1, 1]} : vector<8x24xbf16> to vector<8x8xbf16>
      %66 = arith.index_cast %arg2 : i32 to index
      %c0_38 = arith.constant 0 : index
      %c0_39 = arith.constant 0 : index
      %67 = vector.load %arg14[%66, %c0_38, %c0_39] : memref<4x8x8xbf16, #tpu.memory_space<vmem>>, vector<1x8x8xbf16>
      %68 = vector.shape_cast %67 : vector<1x8x8xbf16> to vector<8x8xbf16>
      %69 = vector.shape_cast %65 : vector<8x8xbf16> to vector<1x8x8xbf16>
      tpu.vector_store %arg14[%66, %c0_38, %c0_39], %69 {strides = array<i32>} : memref<4x8x8xbf16, #tpu.memory_space<vmem>>, vector<1x8x8xbf16>,
    } else {
    }
    %c8_i32 = arith.constant 8 : i32
    %3 = arith.muli %arg1, %c8_i32 : i32
    %4 = tpu.assume_multiple %3, 8 : i32
    %5 = arith.index_cast %arg2 : i32 to index
    %6 = arith.index_cast %4 : i32 to index
    %c0 = arith.constant 0 : index
    %7 = vector.load %arg12[%5, %6, %c0] : memref<4x8x8xbf16, #tpu.memory_space<vmem>>, vector<1x8x8xbf16>
    %8 = vector.shape_cast %7 : vector<1x8x8xbf16> to vector<8x8xbf16>
    %9 = arith.index_cast %arg2 : i32 to index
    %c0_1 = arith.constant 0 : index
    %c0_2 = arith.constant 0 : index
    %10 = vector.load %arg13[%9, %c0_1, %c0_2] : memref<4x8x8xbf16, #tpu.memory_space<vmem>>, vector<1x8x8xbf16>
    %11 = vector.shape_cast %10 : vector<1x8x8xbf16> to vector<8x8xbf16>
    %12 = arith.index_cast %arg2 : i32 to index
    %c0_3 = arith.constant 0 : index
    %c0_4 = arith.constant 0 : index
    %13 = vector.load %arg14[%12, %c0_3, %c0_4] : memref<4x8x8xbf16, #tpu.memory_space<vmem>>, vector<1x8x8xbf16>
    %14 = vector.shape_cast %13 : vector<1x8x8xbf16> to vector<8x8xbf16>
    %cst = arith.constant dense<0.000000e+00> : vector<8x8xf32>
    %15 = tpu.matmul %8, %11, %cst {dimension_numbers = #tpu.dot_dimension_numbers<[1], [1], [0], [0], [0, 0, 1, 0], [], []>} : vector<8x8xbf16>, vector<8x8xbf16>, vector<8x8xf32> -> vector<8x8xf32>
    %cst_5 = arith.constant 0.353553385 : f32
    %16 = vector.broadcast %cst_5 : f32 to vector<8x8xf32>
    %17 = arith.mulf %15, %16 : vector<8x8xf32>
    %cst_6 = arith.constant 2.99573231 : f32
    %18 = vector.broadcast %cst_6 : f32 to vector<8x8xf32>
    %19 = arith.subf %17, %18 : vector<8x8xf32>
    %20 = arith.negf %19 : vector<8x8xf32>
    %21 = math.exp %20 : vector<8x8xf32>
    %cst_7 = arith.constant 1.000000e+00 : f32
    %22 = vector.broadcast %cst_7 : f32 to vector<8x8xf32>
    %23 = arith.addf %22, %21 : vector<8x8xf32>
    %24 = arith.divf %22, %23 : vector<8x8xf32>
    %25 = arith.truncf %24 : vector<8x8xf32> to vector<8x8xbf16>
    %c0_8 = arith.constant 0 : index
    %c0_9 = arith.constant 0 : index
    %c0_10 = arith.constant 0 : index
    %c0_11 = arith.constant 0 : index
    %26 = vector.load %arg11[%c0_8, %c0_9, %c0_10, %c0_11] : memref<1x1x8x8xbf16, #tpu.memory_space<vmem>>, vector<1x1x8x8xbf16>
    %27 = vector.shape_cast %26 : vector<1x1x8x8xbf16> to vector<8x8xbf16>
    %28 = vector.shape_cast %25 : vector<8x8xbf16> to vector<1x1x8x8xbf16>
    tpu.vector_store %arg11[%c0_8, %c0_9, %c0_10, %c0_11], %28 {strides = array<i32>} : memref<1x1x8x8xbf16, #tpu.memory_space<vmem>>, vector<1x1x8x8xbf16>,
    %29 = arith.truncf %24 : vector<8x8xf32> to vector<8x8xbf16>
    %cst_12 = arith.constant dense<0.000000e+00> : vector<8x8xf32>
    %30 = tpu.matmul %29, %14, %cst_12 {dimension_numbers = #tpu.dot_dimension_numbers<[1], [0], [0], [1], [0, 0, 1, 1], [], []>} : vector<8x8xbf16>, vector<8x8xbf16>, vector<8x8xf32> -> vector<8x8xf32>
    %c0_i32_13 = arith.constant 0 : i32
    %31 = arith.cmpi eq, %arg2, %c0_i32_13 : i32
    %32 = arith.extui %31 : i1 to i32
    %c0_i32_14 = arith.constant 0 : i32
    %33 = arith.cmpi ne, %32, %c0_i32_14 : i32
    scf.if %33 {
      %cst_24 = arith.constant 0.000000e+00 : f32
      %44 = vector.broadcast %cst_24 : f32 to vector<8x32xf32>
      %c0_25 = arith.constant 0 : index
      %c0_26 = arith.constant 0 : index
      %45 = vector.load %arg15[%c0_25, %c0_26] : memref<8x32xf32, #tpu.memory_space<vmem>>, vector<8x32xf32>
      tpu.vector_store %arg15[%c0_25, %c0_26], %44 {strides = array<i32>} : memref<8x32xf32, #tpu.memory_space<vmem>>, vector<8x32xf32>,
    } else {
    }
    %c0_15 = arith.constant 0 : index
    %c0_16 = arith.constant 0 : index
    %34 = vector.load %arg15[%c0_15, %c0_16] : memref<8x32xf32, #tpu.memory_space<vmem>>, vector<8x32xf32>
    %35 = arith.truncf %30 : vector<8x8xf32> to vector<8x8xbf16>
    %c0_17 = arith.constant 0 : index
    %c0_18 = arith.constant 0 : index
    %c0_19 = arith.constant 0 : index
    %36 = vector.load %arg6[%c0_17, %c0_18, %c0_19] : memref<1x8x32xbf16, #tpu.memory_space<vmem>>, vector<1x8x32xbf16>
    %37 = vector.shape_cast %36 : vector<1x8x32xbf16> to vector<8x32xbf16>
    %cst_20 = arith.constant dense<0.000000e+00> : vector<8x32xf32>
    %38 = tpu.matmul %35, %37, %cst_20 {dimension_numbers = #tpu.dot_dimension_numbers<[1], [0], [0], [1], [0, 0, 1, 1], [], []>} : vector<8x8xbf16>, vector<8x32xbf16>, vector<8x32xf32> -> vector<8x32xf32>
    %39 = arith.addf %34, %38 : vector<8x32xf32>
    %c0_21 = arith.constant 0 : index
    %c0_22 = arith.constant 0 : index
    %40 = vector.load %arg15[%c0_21, %c0_22] : memref<8x32xf32, #tpu.memory_space<vmem>>, vector<8x32xf32>
    tpu.vector_store %arg15[%c0_21, %c0_22], %39 {strides = array<i32>} : memref<8x32xf32, #tpu.memory_space<vmem>>, vector<8x32xf32>,
    %c3_i32 = arith.constant 3 : i32
    %41 = arith.cmpi eq, %arg2, %c3_i32 : i32
    %42 = arith.extui %41 : i1 to i32
    %c0_i32_23 = arith.constant 0 : i32
    %43 = arith.cmpi ne, %42, %c0_i32_23 : i32
    scf.if %43 {
      %c0_24 = arith.constant 0 : index
      %c0_25 = arith.constant 0 : index
      %44 = vector.load %arg15[%c0_24, %c0_25] : memref<8x32xf32, #tpu.memory_space<vmem>>, vector<8x32xf32>
      %c0_26 = arith.constant 0 : index
      %c0_27 = arith.constant 0 : index
      %45 = vector.load %arg7[%c0_26, %c0_27] : memref<1x32xbf16, #tpu.memory_space<vmem>>, vector<1x32xbf16>
      %46 = arith.extf %45 : vector<1x32xbf16> to vector<1x32xf32>
      %47 = vector.broadcast %46 : vector<1x32xf32> to vector<8x32xf32>
      %48 = arith.addf %44, %47 : vector<8x32xf32>
      %49 = arith.truncf %48 : vector<8x32xf32> to vector<8x32xbf16>
      %c0_28 = arith.constant 0 : index
      %c0_29 = arith.constant 0 : index
      %50 = vector.load %arg8[%c0_28, %c0_29] : memref<32x32xbf16, #tpu.memory_space<vmem>>, vector<32x32xbf16>
      %cst_30 = arith.constant dense<0.000000e+00> : vector<8x32xf32>
      %51 = tpu.matmul %49, %50, %cst_30 {dimension_numbers = #tpu.dot_dimension_numbers<[1], [0], [0], [1], [0, 0, 1, 1], [], []>} : vector<8x32xbf16>, vector<32x32xbf16>, vector<8x32xf32> -> vector<8x32xf32>
      %c0_31 = arith.constant 0 : index
      %c0_32 = arith.constant 0 : index
      %52 = vector.load %arg9[%c0_31, %c0_32] : memref<1x32xbf16, #tpu.memory_space<vmem>>, vector<1x32xbf16>
      %53 = arith.extf %52 : vector<1x32xbf16> to vector<1x32xf32>
      %54 = vector.broadcast %53 : vector<1x32xf32> to vector<8x32xf32>
      %55 = arith.addf %51, %54 : vector<8x32xf32>
      %cst_33 = arith.constant 0.000000e+00 : f32
      %56 = vector.broadcast %cst_33 : f32 to vector<8x32xf32>
      %57 = arith.maximumf %55, %56 : vector<8x32xf32>
      %c0_34 = arith.constant 0 : index
      %c0_35 = arith.constant 0 : index
      %c0_36 = arith.constant 0 : index
      %58 = vector.load %arg10[%c0_34, %c0_35, %c0_36] : memref<1x8x32xf32, #tpu.memory_space<vmem>>, vector<1x8x32xf32>
      %59 = vector.shape_cast %58 : vector<1x8x32xf32> to vector<8x32xf32>
      %60 = vector.shape_cast %57 : vector<8x32xf32> to vector<1x8x32xf32>
      tpu.vector_store %arg10[%c0_34, %c0_35, %c0_36], %60 {strides = array<i32>} : memref<1x8x32xf32, #tpu.memory_space<vmem>>, vector<1x8x32xf32>,
    } else {
    }
    return
  }
  func.func @transform_0(%arg0: i32, %arg1: i32, %arg2: i32) -> (i32, i32, i32) {
    %c0_i32 = arith.constant 0 : i32
    %c0_i32_0 = arith.constant 0 : i32
    %c0_i32_1 = arith.constant 0 : i32
    return %arg0, %c0_i32, %c0_i32_0 : i32, i32, i32
  }
  func.func @transform_1(%arg0: i32, %arg1: i32, %arg2: i32) -> (i32, i32, i32) {
    %c0_i32 = arith.constant 0 : i32
    %c0_i32_0 = arith.constant 0 : i32
    %c0_i32_1 = arith.constant 0 : i32
    return %arg2, %c0_i32, %c0_i32_0 : i32, i32, i32
  }
  func.func @transform_2(%arg0: i32, %arg1: i32, %arg2: i32) -> (i32, i32, i32) {
    %c0_i32 = arith.constant 0 : i32
    %c0_i32_0 = arith.constant 0 : i32
    %c0_i32_1 = arith.constant 0 : i32
    return %arg2, %c0_i32, %c0_i32_0 : i32, i32, i32
  }
  func.func @transform_3(%arg0: i32, %arg1: i32, %arg2: i32) -> (i32, i32, i32) {
    %c0_i32 = arith.constant 0 : i32
    %c0_i32_0 = arith.constant 0 : i32
    %c0_i32_1 = arith.constant 0 : i32
    return %arg2, %c0_i32, %c0_i32_0 : i32, i32, i32
  }
  func.func @transform_4(%arg0: i32, %arg1: i32, %arg2: i32) -> (i32, i32) {
    %c0_i32 = arith.constant 0 : i32
    %c0_i32_0 = arith.constant 0 : i32
    %c0_i32_1 = arith.constant 0 : i32
    return %c0_i32, %c0_i32_0 : i32, i32
  }
  func.func @transform_5(%arg0: i32, %arg1: i32, %arg2: i32) -> (i32, i32) {
    %c0_i32 = arith.constant 0 : i32
    %c0_i32_0 = arith.constant 0 : i32
    %c0_i32_1 = arith.constant 0 : i32
    return %c0_i32, %c0_i32_0 : i32, i32
  }
  func.func @transform_6(%arg0: i32, %arg1: i32, %arg2: i32) -> (i32, i32) {
    %c0_i32 = arith.constant 0 : i32
    %c0_i32_0 = arith.constant 0 : i32
    %c0_i32_1 = arith.constant 0 : i32
    return %c0_i32, %c0_i32_0 : i32, i32
  }
  func.func @transform_7(%arg0: i32, %arg1: i32, %arg2: i32) -> (i32, i32, i32) {
    %c0_i32 = arith.constant 0 : i32
    %c0_i32_0 = arith.constant 0 : i32
    return %arg0, %arg1, %c0_i32 : i32, i32, i32
  }
  func.func @transform_8(%arg0: i32, %arg1: i32, %arg2: i32) -> (i32, i32, i32, i32) {
    %c0_i32 = arith.constant 0 : i32
    %c0_i32_0 = arith.constant 0 : i32
    return %arg0, %arg2, %arg1, %c0_i32 : i32, i32, i32, i32
  }
}

</mosaic_0001>

<llo_original>
// kernel: tpu_custom_call.1
$region0: #{tpu_custom_call.1}
  #allocation0 [shape = 'u32[]', space=smem, size = 0x4, offset = 0x4, fixed_abs, tag = 'smem constant byte address 0x4 - core index']
  #allocation1 [shape = 'u32[144,128]{1,0:T(1,128)}', space=vmem, size = 0x12000, scoped, tag = 'internal scratch']
  #allocation2 [shape = 'bf16[4,8,8]{2,1,0:T(8,128)(2,1)}', space=vmem, size = 0x2000, scoped, tag = 'scratch operand']
  #allocation3 [shape = 'bf16[4,8,8]{2,1,0:T(8,128)(2,1)}', space=vmem, size = 0x2000, scoped, tag = 'scratch operand']
  #allocation4 [shape = 'bf16[4,8,8]{2,1,0:T(8,128)(2,1)}', space=vmem, size = 0x2000, scoped, tag = 'scratch operand']
  #allocation5 [shape = 'f32[8,32]{1,0:T(8,128)}', space=vmem, size = 0x1000, scoped, tag = 'scratch operand']
  %s0 = inlined_call_operand.vmem [shape: bf16[2,8,32], index: 0, kind: input, shape index: {}]
  %s1 = inlined_call_operand.vmem [shape: bf16[4,32,24], index: 1, kind: input, shape index: {}]
  %s2 = inlined_call_operand.vmem [shape: bf16[4,1,24], index: 2, kind: input, shape index: {}]
  %s3 = inlined_call_operand.vmem [shape: bf16[4,8,32], index: 3, kind: input, shape index: {}]
  %s4 = inlined_call_operand.vmem [shape: bf16[1,32], index: 4, kind: input, shape index: {}]
  %s5 = inlined_call_operand.vmem [shape: bf16[32,32], index: 5, kind: input, shape index: {}]
  %s6 = inlined_call_operand.vmem [shape: bf16[1,32], index: 6, kind: input, shape index: {}]
  %s7 = inlined_call_operand.hbm [shape: f32[2,8,32], index: 7, kind: output, shape index: {0}]
  %s8 = inlined_call_operand.hbm [shape: bf16[2,4,8,8], index: 8, kind: output, shape index: {1}]
  %9 = xla_tuple %s7, %s8
  %s10 = sld [smem:[#allocation0]]
  $region81: #{tpu_custom_call.1} parent=0
    _
  %s12 = ssub.s32 1, %s10
  %s13 = scalar_select 0, %s12, %s10
  $region1: #{tpu_custom_call.1} parent=0
    #allocation6 [shape = 'u8[8192]{0}', space=vmem, size = 0x2000, scoped, tag = 'output window, operand 0']
    #allocation7 [shape = 's32[2]{0}', space=sflag, size = 0x8, scoped, tag = 'scoped memory for tpu_custom_call.1']
    #allocation8 [shape = 'u8[4096]{0}', space=vmem, size = 0x1000, scoped, tag = 'output window, operand 1']
    #allocation9 [shape = 's32[2]{0}', space=sflag, size = 0x8, scoped, tag = 'scoped memory for tpu_custom_call.1']
    %14 = vsyncpa [#allocation7], 0
    %s15 = scalar_lea.sflag [#allocation7], 1
    %16 = vsyncpa %s15, 0
    %17 = vsyncpa [#allocation9], 0
    %s18 = scalar_lea.sflag [#allocation9], 1
    %19 = vsyncpa %s18, 0
    loop: start=0, step=1, limit=10
    $region2: #{tpu_custom_call.1} parent=1 // loop_pre_header
      _
    $region3: #{tpu_custom_call.1} parent=1 // loop_header
      %s21 = sphi 0, %s25
      %p22 = scmp.ge.s32.totalorder %s21, 10
      %s28 = sphi 0, %s47
      %s29 = sphi 0, %s43
      %s30 = sphi 0, %s39
      %s31 = sphi 0, %s28
      %s32 = sphi 0, %s29
      %s33 = sphi 0, %s30
      %s34 = sphi 0, %s31
      %s35 = sphi 0, %s32
      %s36 = sphi 0, %s33
      %s50 = sphi 0, %s52
      %s53 = sphi 0, %s50
      %s54 = sphi 0, %s53
      %s70 = sphi 0, %s54
      %s76 = sphi 0, %s78
      %s79 = sphi 0, %s76
      %s80 = sphi 0, %s79
      %s96 = sphi 0, %s80
      %s102 = sphi 0, %s104
      %s105 = sphi 0, %s102
      %s106 = sphi 0, %s105
      %s122 = sphi 0, %s106
      %s128 = sphi 0, %s130
      %s131 = sphi 0, %s128
      %s132 = sphi 0, %s131
      %s148 = sphi 0, %s132
      %s152 = sphi 0, %s152
      %s154 = sphi 0, %s152
      %s155 = sphi 0, %s154
      %s169 = sphi 0, %s155
      %s173 = sphi 0, %s173
      %s175 = sphi 0, %s173
      %s176 = sphi 0, %s175
      %s190 = sphi 0, %s176
      %s194 = sphi 0, %s194
      %s196 = sphi 0, %s194
      %s197 = sphi 0, %s196
      %s211 = sphi 0, %s197
      %s219 = sphi 0, %s221
      %s222 = sphi 0, %s219
      %s223 = sphi 0, %s222
      %s239 = sphi 0, %s223
      %s249 = sphi 0, %s251
      %s252 = sphi 0, %s249
      %s253 = sphi 0, %s252
      %s269 = sphi 0, %s253
    $region4: #{tpu_custom_call.1} parent=1 // loop_header_branch
      %24 = sbr.rel (%p22) target = $region8
    $region5: #{tpu_custom_call.1} parent=1 // loop_body
      %s26 = ssub.s32 %s21, 1
      %s27 = ssub.s32 %s21, 2
      %s37 = sadd.s32 1, %s30
      %p38 = scmp.ge.s32.totalorder %s37, 4
      %s39 = scalar_select %p38, 0, %s37
      %s40 = sadd.s32 1, %s29
      %s41 = scalar_select %p38, %s40, %s29
      %p42 = scmp.ge.s32.totalorder %s41, 1
      %s43 = scalar_select %p42, 0, %s41
      %s44 = sadd.s32 1, %s28
      %s45 = scalar_select %p42, %s44, %s28
      %p46 = scmp.ge.s32.totalorder %s45, 2
      %s47 = scalar_select %p46, 0, %s45
      %s48 = ssub.s32 %s28, %s47
      %p49 = scmp.eq.s32.totalorder %s48, 0
      %s51 = sadd.s32 %s50, 1
      %s52 = scalar_select %p49, %s50, %s51
      %p55 = pneg %p49
      %p56 = scmp.eq.s32.totalorder %s21, 7
      %p57 = por %p55, %p56
      %p58 = scmp.ne.s32.totalorder %s50, %s53
      %p59 = scmp.eq.s32.totalorder %s21, 0
      %p60 = por %p58, %p59
      %p61 = scmp.ne.s32.totalorder %s50, %s53
      %p62 = scmp.eq.s32.totalorder %s26, 7
      %p63 = por %p61, %p62
      %p64 = scmp.ne.s32.totalorder %s53, %s54
      %p65 = scmp.eq.s32.totalorder %s26, 0
      %p66 = por %p64, %p65
      %p67 = scmp.ne.s32.totalorder %s53, %s54
      %p68 = scmp.eq.s32.totalorder %s27, 7
      %p69 = por %p67, %p68
      %p71 = scmp.ne.s32.totalorder %s54, %s70
      %p72 = scmp.eq.s32.totalorder %s27, 0
      %p73 = por %p71, %p72
      %s74 = ssub.s32 %s30, %s39
      %p75 = scmp.eq.s32.totalorder %s74, 0
      %s77 = sadd.s32 %s76, 1
      %s78 = scalar_select %p75, %s76, %s77
      %p81 = pneg %p75
      %p82 = scmp.eq.s32.totalorder %s21, 7
      %p83 = por %p81, %p82
      %p84 = scmp.ne.s32.totalorder %s76, %s79
      %p85 = scmp.eq.s32.totalorder %s21, 0
      %p86 = por %p84, %p85
      %p87 = scmp.ne.s32.totalorder %s76, %s79
      %p88 = scmp.eq.s32.totalorder %s26, 7
      %p89 = por %p87, %p88
      %p90 = scmp.ne.s32.totalorder %s79, %s80
      %p91 = scmp.eq.s32.totalorder %s26, 0
      %p92 = por %p90, %p91
      %p93 = scmp.ne.s32.totalorder %s79, %s80
      %p94 = scmp.eq.s32.totalorder %s27, 7
      %p95 = por %p93, %p94
      %p97 = scmp.ne.s32.totalorder %s80, %s96
      %p98 = scmp.eq.s32.totalorder %s27, 0
      %p99 = por %p97, %p98
      %s100 = ssub.s32 %s30, %s39
      %p101 = scmp.eq.s32.totalorder %s100, 0
      %s103 = sadd.s32 %s102, 1
      %s104 = scalar_select %p101, %s102, %s103
      %p107 = pneg %p101
      %p108 = scmp.eq.s32.totalorder %s21, 7
      %p109 = por %p107, %p108
      %p110 = scmp.ne.s32.totalorder %s102, %s105
      %p111 = scmp.eq.s32.totalorder %s21, 0
      %p112 = por %p110, %p111
      %p113 = scmp.ne.s32.totalorder %s102, %s105
      %p114 = scmp.eq.s32.totalorder %s26, 7
      %p115 = por %p113, %p114
      %p116 = scmp.ne.s32.totalorder %s105, %s106
      %p117 = scmp.eq.s32.totalorder %s26, 0
      %p118 = por %p116, %p117
      %p119 = scmp.ne.s32.totalorder %s105, %s106
      %p120 = scmp.eq.s32.totalorder %s27, 7
      %p121 = por %p119, %p120
      %p123 = scmp.ne.s32.totalorder %s106, %s122
      %p124 = scmp.eq.s32.totalorder %s27, 0
      %p125 = por %p123, %p124
      %s126 = ssub.s32 %s30, %s39
      %p127 = scmp.eq.s32.totalorder %s126, 0
      %s129 = sadd.s32 %s128, 1
      %s130 = scalar_select %p127, %s128, %s129
      %p133 = pneg %p127
      %p134 = scmp.eq.s32.totalorder %s21, 7
      %p135 = por %p133, %p134
      %p136 = scmp.ne.s32.totalorder %s128, %s131
      %p137 = scmp.eq.s32.totalorder %s21, 0
      %p138 = por %p136, %p137
      %p139 = scmp.ne.s32.totalorder %s128, %s131
      %p140 = scmp.eq.s32.totalorder %s26, 7
      %p141 = por %p139, %p140
      %p142 = scmp.ne.s32.totalorder %s131, %s132
      %p143 = scmp.eq.s32.totalorder %s26, 0
      %p144 = por %p142, %p143
      %p145 = scmp.ne.s32.totalorder %s131, %s132
      %p146 = scmp.eq.s32.totalorder %s27, 7
      %p147 = por %p145, %p146
      %p149 = scmp.ne.s32.totalorder %s132, %s148
      %p150 = scmp.eq.s32.totalorder %s27, 0
      %p151 = por %p149, %p150
      %s153 = sadd.s32 %s152, 1
      %p156 = scmp.eq.s32.totalorder %s21, 7
      %p157 = scmp.ne.s32.totalorder %s152, %s154
      %p158 = scmp.eq.s32.totalorder %s21, 0
      %p159 = por %p157, %p158
      %p160 = scmp.ne.s32.totalorder %s152, %s154
      %p161 = scmp.eq.s32.totalorder %s26, 7
      %p162 = por %p160, %p161
      %p163 = scmp.ne.s32.totalorder %s154, %s155
      %p164 = scmp.eq.s32.totalorder %s26, 0
      %p165 = por %p163, %p164
      %p166 = scmp.ne.s32.totalorder %s154, %s155
      %p167 = scmp.eq.s32.totalorder %s27, 7
      %p168 = por %p166, %p167
      %p170 = scmp.ne.s32.totalorder %s155, %s169
      %p171 = scmp.eq.s32.totalorder %s27, 0
      %p172 = por %p170, %p171
      %s174 = sadd.s32 %s173, 1
      %p177 = scmp.eq.s32.totalorder %s21, 7
      %p178 = scmp.ne.s32.totalorder %s173, %s175
      %p179 = scmp.eq.s32.totalorder %s21, 0
      %p180 = por %p178, %p179
      %p181 = scmp.ne.s32.totalorder %s173, %s175
      %p182 = scmp.eq.s32.totalorder %s26, 7
      %p183 = por %p181, %p182
      %p184 = scmp.ne.s32.totalorder %s175, %s176
      %p185 = scmp.eq.s32.totalorder %s26, 0
      %p186 = por %p184, %p185
      %p187 = scmp.ne.s32.totalorder %s175, %s176
      %p188 = scmp.eq.s32.totalorder %s27, 7
      %p189 = por %p187, %p188
      %p191 = scmp.ne.s32.totalorder %s176, %s190
      %p192 = scmp.eq.s32.totalorder %s27, 0
      %p193 = por %p191, %p192
      %s195 = sadd.s32 %s194, 1
      %p198 = scmp.eq.s32.totalorder %s21, 7
      %p199 = scmp.ne.s32.totalorder %s194, %s196
      %p200 = scmp.eq.s32.totalorder %s21, 0
      %p201 = por %p199, %p200
      %p202 = scmp.ne.s32.totalorder %s194, %s196
      %p203 = scmp.eq.s32.totalorder %s26, 7
      %p204 = por %p202, %p203
      %p205 = scmp.ne.s32.totalorder %s196, %s197
      %p206 = scmp.eq.s32.totalorder %s26, 0
      %p207 = por %p205, %p206
      %p208 = scmp.ne.s32.totalorder %s196, %s197
      %p209 = scmp.eq.s32.totalorder %s27, 7
      %p210 = por %p208, %p209
      %p212 = scmp.ne.s32.totalorder %s197, %s211
      %p213 = scmp.eq.s32.totalorder %s27, 0
      %p214 = por %p212, %p213
      %s215 = ssub.s32 %s28, %s47
      %s216 = ssub.s32 %s29, %s43
      %s217 = sor.u32 %s215, %s216
      %p218 = scmp.eq.s32.totalorder %s217, 0
      %s220 = sadd.s32 %s219, 1
      %s221 = scalar_select %p218, %s219, %s220
      %p224 = pneg %p218
      %p225 = scmp.eq.s32.totalorder %s21, 7
      %p226 = por %p224, %p225
      %p227 = scmp.ne.s32.totalorder %s219, %s222
      %p228 = scmp.eq.s32.totalorder %s21, 0
      %p229 = por %p227, %p228
      %p230 = scmp.ne.s32.totalorder %s219, %s222
      %p231 = scmp.eq.s32.totalorder %s26, 7
      %p232 = por %p230, %p231
      %p233 = scmp.ne.s32.totalorder %s222, %s223
      %p234 = scmp.eq.s32.totalorder %s26, 0
      %p235 = por %p233, %p234
      %p236 = scmp.ne.s32.totalorder %s222, %s223
      %p237 = scmp.eq.s32.totalorder %s27, 7
      %p238 = por %p236, %p237
      %p240 = scmp.ne.s32.totalorder %s223, %s239
      %p241 = scmp.eq.s32.totalorder %s27, 0
      %p242 = por %p240, %p241
      %s243 = ssub.s32 %s28, %s47
      %s244 = ssub.s32 %s30, %s39
      %s245 = sor.u32 %s243, %s244
      %s246 = ssub.s32 %s29, %s43
      %s247 = sor.u32 %s245, %s246
      %p248 = scmp.eq.s32.totalorder %s247, 0
      %s250 = sadd.s32 %s249, 1
      %s251 = scalar_select %p248, %s249, %s250
      %p254 = pneg %p248
      %p255 = scmp.eq.s32.totalorder %s21, 7
      %p256 = por %p254, %p255
      %p257 = scmp.ne.s32.totalorder %s249, %s252
      %p258 = scmp.eq.s32.totalorder %s21, 0
      %p259 = por %p257, %p258
      %p260 = scmp.ne.s32.totalorder %s249, %s252
      %p261 = scmp.eq.s32.totalorder %s26, 7
      %p262 = por %p260, %p261
      %p263 = scmp.ne.s32.totalorder %s252, %s253
      %p264 = scmp.eq.s32.totalorder %s26, 0
      %p265 = por %p263, %p264
      %p266 = scmp.ne.s32.totalorder %s252, %s253
      %p267 = scmp.eq.s32.totalorder %s27, 7
      %p268 = por %p266, %p267
      %p270 = scmp.ne.s32.totalorder %s253, %s269
      %p271 = scmp.eq.s32.totalorder %s27, 0
      %p272 = por %p270, %p271
      %p273 = scmp.le.s32.totalorder 1, %s21
      %p274 = scmp.lt.s32.totalorder %s21, 9
      %p275 = pnand %p273, %p274
      %p276 = pneg %p275
      // Predicated region
      $region9: #{tpu_custom_call.1} parent=5 // pred_check
        _
      $region10: #{tpu_custom_call.1} parent=5 // pred_check_branch
        %278 = sbr.rel (%p275) target = $region12
      $region11: #{tpu_custom_call.1} parent=5 // pred_region
        %s279 = ssub.s32 %s21, 1
        // Predicated region
        $region13: #{tpu_custom_call.1} parent=11 // pred_check
          %p280 = pneg %p165
        $region14: #{tpu_custom_call.1} parent=11 // pred_check_branch
          %282 = sbr.rel (%p280) target = $region16
        $region15: #{tpu_custom_call.1} parent=11 // pred_region
          _
        $region16: #{tpu_custom_call.1} parent=11 // pred_fallthru
          _
        // Predicated region
        $region17: #{tpu_custom_call.1} parent=11 // pred_check
          %p283 = pneg %p186
        $region18: #{tpu_custom_call.1} parent=11 // pred_check_branch
          %285 = sbr.rel (%p283) target = $region20
        $region19: #{tpu_custom_call.1} parent=11 // pred_region
          _
        $region20: #{tpu_custom_call.1} parent=11 // pred_fallthru
          _
        // Predicated region
        $region21: #{tpu_custom_call.1} parent=11 // pred_check
          %p286 = pneg %p207
        $region22: #{tpu_custom_call.1} parent=11 // pred_check_branch
          %288 = sbr.rel (%p286) target = $region24
        $region23: #{tpu_custom_call.1} parent=11 // pred_region
          _
        $region24: #{tpu_custom_call.1} parent=11 // pred_fallthru
          _
      $region12: #{tpu_custom_call.1} parent=5 // pred_fallthru
        _
      %p289 = scmp.lt.s32.totalorder %s21, 8
      // Predicated region
      $region25: #{tpu_custom_call.1} parent=5 // pred_check
        %p290 = pneg %p289
      $region26: #{tpu_custom_call.1} parent=5 // pred_check_branch
        %292 = sbr.rel (%p290) target = $region28
      $region27: #{tpu_custom_call.1} parent=5 // pred_region
        // Predicated region
        $region29: #{tpu_custom_call.1} parent=27 // pred_check
          %p293 = pneg %p60
        $region30: #{tpu_custom_call.1} parent=27 // pred_check_branch
          %295 = sbr.rel (%p293) target = $region32
        $region31: #{tpu_custom_call.1} parent=27 // pred_region
          %p296 = scmp.lt.s32.totalorder %s28, 1
          %s297 = scalar_select %p296, %s28, 1
          %s298 = smul.addr %s297, 4
          %s299 = scalar_lea.vmem %s0, %s298
        $region32: #{tpu_custom_call.1} parent=27 // pred_fallthru
          _
        // Predicated region
        $region33: #{tpu_custom_call.1} parent=27 // pred_check
          %p300 = pneg %p86
        $region34: #{tpu_custom_call.1} parent=27 // pred_check_branch
          %302 = sbr.rel (%p300) target = $region36
        $region35: #{tpu_custom_call.1} parent=27 // pred_region
          %p303 = scmp.lt.s32.totalorder %s30, 3
          %s304 = scalar_select %p303, %s30, 3
          %s305 = smul.addr %s304, 4
          %s306 = smul.addr %s305, 4
          %s307 = scalar_lea.vmem %s1, %s306
        $region36: #{tpu_custom_call.1} parent=27 // pred_fallthru
          _
        // Predicated region
        $region37: #{tpu_custom_call.1} parent=27 // pred_check
          %p308 = pneg %p112
        $region38: #{tpu_custom_call.1} parent=27 // pred_check_branch
          %310 = sbr.rel (%p308) target = $region40
        $region39: #{tpu_custom_call.1} parent=27 // pred_region
          %p311 = scmp.lt.s32.totalorder %s30, 3
          %s312 = scalar_select %p311, %s30, 3
          %s313 = scalar_lea.vmem %s2, %s312
        $region40: #{tpu_custom_call.1} parent=27 // pred_fallthru
          _
        // Predicated region
        $region41: #{tpu_custom_call.1} parent=27 // pred_check
          %p314 = pneg %p138
        $region42: #{tpu_custom_call.1} parent=27 // pred_check_branch
          %316 = sbr.rel (%p314) target = $region44
        $region43: #{tpu_custom_call.1} parent=27 // pred_region
          %p317 = scmp.lt.s32.totalorder %s30, 3
          %s318 = scalar_select %p317, %s30, 3
          %s319 = smul.addr %s318, 4
          %s320 = scalar_lea.vmem %s3, %s319
        $region44: #{tpu_custom_call.1} parent=27 // pred_fallthru
          _
      $region28: #{tpu_custom_call.1} parent=5 // pred_fallthru
        _
      %p321 = scmp.le.s32.totalorder 1, %s21
      %p322 = scmp.lt.s32.totalorder %s21, 9
      %p323 = pnand %p321, %p322
      %p324 = pneg %p323
      // Predicated region
      $region45: #{tpu_custom_call.1} parent=5 // pred_check
        _
      $region46: #{tpu_custom_call.1} parent=5 // pred_check_branch
        %326 = sbr.rel (%p323) target = $region48
      $region47: #{tpu_custom_call.1} parent=5 // pred_region
        %s327 = ssub.s32 %s21, 1
        %p328 = scmp.lt.s32.totalorder %s31, 1
        %s329 = scalar_select %p328, %s31, 1
        %s330 = smul.addr %s329, 4
        %s331 = scalar_lea.vmem %s0, %s330
        %p332 = pneg %p66
        %p333 = pneg %p63
        %p334 = scmp.lt.s32.totalorder %s33, 3
        %s335 = scalar_select %p334, %s33, 3
        %s336 = smul.addr %s335, 4
        %s337 = smul.addr %s336, 4
        %s338 = scalar_lea.vmem %s1, %s337
        %p339 = pneg %p92
        %p340 = pneg %p89
        %p341 = scmp.lt.s32.totalorder %s33, 3
        %s342 = scalar_select %p341, %s33, 3
        %s343 = scalar_lea.vmem %s2, %s342
        %p344 = pneg %p118
        %p345 = pneg %p115
        %p346 = scmp.lt.s32.totalorder %s33, 3
        %s347 = scalar_select %p346, %s33, 3
        %s348 = smul.addr %s347, 4
        %s349 = scalar_lea.vmem %s3, %s348
        %p350 = pneg %p144
        %p351 = pneg %p141
        %p352 = pneg %p165
        %p353 = pneg %p162
        %p354 = pneg %p186
        %p355 = pneg %p183
        %p356 = pneg %p207
        %p357 = pneg %p204
        %p358 = pneg %p235
        %p359 = pneg %p232
        %s360 = sand.u32 %s222, 1
        %s361 = scalar_lea.sflag [#allocation7], %s360
        %s362 = sand.u32 %s222, 1
        %s363 = smul.addr %s362, 8
        %s364 = scalar_lea.vmem [#allocation6], %s363
        %p365 = pneg %p265
        %p366 = pneg %p262
        %s367 = sand.u32 %s252, 1
        %s368 = scalar_lea.sflag [#allocation9], %s367
        %s369 = sand.u32 %s252, 1
        %s370 = smul.addr %s369, 4
        %s371 = scalar_lea.vmem [#allocation8], %s370
        %p372 = scmp.lt.s32.totalorder %s31, 1
        %s373 = scalar_select %p372, %s31, 1
        %s374 = smul.addr %s373, 4
        %s375 = scalar_lea.vmem %s0, %s374
        %p376 = scmp.lt.s32.totalorder %s33, 3
        %s377 = scalar_select %p376, %s33, 3
        %s378 = smul.addr %s377, 4
        %s379 = smul.addr %s378, 4
        %s380 = scalar_lea.vmem %s1, %s379
        %p381 = scmp.lt.s32.totalorder %s33, 3
        %s382 = scalar_select %p381, %s33, 3
        %s383 = scalar_lea.vmem %s2, %s382
        %p384 = scmp.lt.s32.totalorder %s33, 3
        %s385 = scalar_select %p384, %s33, 3
        %s386 = smul.addr %s385, 4
        %s387 = scalar_lea.vmem %s3, %s386
        %p389 = scmp.eq.s32.totalorder %s32, 0
        // Predicated region
        $region49: #{tpu_custom_call.1} parent=47 // pred_check
          %p390 = pneg %p389
        $region50: #{tpu_custom_call.1} parent=47 // pred_check_branch
          %392 = sbr.rel (%p390) target = $region52
        $region51: #{tpu_custom_call.1} parent=47 // pred_region
          %v393 = vld [vmem:[%s375] sm:$0xf]
          %v394 = vld [vmem:[%s380] sm:$0xf]
          %v395 = vld [vmem:[%s380 + $0x4] sm:$0xf]
          %v396 = vld [vmem:[%s380 + $0x8] sm:$0xf]
          %v397 = vld [vmem:[%s380 + $0xc] sm:$0xf]
          %v398 = vld [vmem:[%s383] sm:$0x1]
          %v399 = vunpack.c.l.bf16 %v398
          %v400 = vlaneseq
          %v401 = vshrl.u32 %v400, 7
          %v402 = vsub.s32 0, %v401
          %v403 = vrot.slane %v399, %v402
          %v408 = vunpack.c.l.b16 %v394
          %v409 = vunpack.c.l.b16 %v395
          %v410 = vunpack.c.l.b16 %v396
          %v411 = vunpack.c.l.b16 %v397
          %v412 = vpack.c.b16 %v409, %v408
          %v413 = vpack.c.b16 %v411, %v410
          %vm416 = vcmask 261120
          %v418 = vsel %vm416, %v393, 0
          %420 = vmatprep.subr.bf16.mxu0 0
          %421 = vmatpush1.bf16.msra.mxu0 0
          %422 = vmatprep.subr.bf16.mxu0 0
          %423 = vmatpush1.bf16.msra.mxu0 0
          %424 = vmatprep.subr.bf16.mxu0 0
          %425 = vmatpush1.bf16.msra.mxu0 0
          %426 = vmatprep.subr.bf16.mxu0 0
          %427 = vmatpush1.bf16.msra.mxu0 0
          %428 = vmatprep.subr.bf16.mxu0 0
          %429 = vmatpush1.bf16.msra.mxu0 0
          %430 = vmatprep.subr.bf16.mxu0 0
          %431 = vmatpush1.bf16.msra.mxu0 0
          %432 = vmatprep.subr.bf16.mxu0 0
          %433 = vmatpush1.bf16.msra.mxu0 %v413
          %434 = vmatprep.subr.bf16.mxu0 0
          %435 = vmatpush1.bf16.msra.mxu0 %v412
          %436 = vmatprep.subr.bf16.mxu0 0
          %437 = vmatpush2.bf16.msra.mxu0 0
          %438 = vmatprep.subr.bf16.mxu0 0
          %439 = vmatpush2.bf16.msra.mxu0 0
          %440 = vmatprep.subr.bf16.mxu0 0
          %441 = vmatpush2.bf16.msra.mxu0 0
          %442 = vmatprep.subr.bf16.mxu0 0
          %443 = vmatpush2.bf16.msra.mxu0 0
          %444 = vmatprep.subr.bf16.mxu0 0
          %445 = vmatpush2.bf16.msra.mxu0 0
          %446 = vmatprep.subr.bf16.mxu0 0
          %447 = vmatpush2.bf16.msra.mxu0 0
          %448 = vmatprep.subr.bf16.mxu0 0
          %449 = vmatpush2.bf16.msra.mxu0 0
          %450 = vmatprep.subr.bf16.mxu0 0
          %451 = vmatpush2.bf16.msra.mxu0 0
          %452 = vmatprep.mubr.bf16.mxu0 0
          %453 = vmatmul.mubr.bf16.gmra.mxu0 %v418
          %v454 = vpop.f32.mrf.mxu0
          %v455 = vadd.f32 %v403, %v454
          %v456 = vpop.f32.mrf.mxu0
          %v457 = vpop.f32.mrf.mxu0
          %v458 = vpop.f32.mrf.mxu0
          %459 = vdwg.mxu0
          %v460 = vpack.c.bf16 %v455, %v455
          %s461 = smul.addr %s33, 4
          %s462 = scalar_lea.vmem [#allocation2], %s461
          %vm463 = vcmask 60416
          %464 = vst.msk [vmem:[%s462] sm:$0xf] %vm463, %v460
          %v466 = vunpack.c.l.b16 %v460
          %v467 = vpack.c.b16 %v466, %v466
          %468 = vrot.lane.b32.xlu0 %v467, 120
          %v469 = vpop.permute.xlu0 %468
          %s471 = smul.addr %s33, 4
          %s472 = scalar_lea.vmem [#allocation3], %s471
          %473 = vst.msk [vmem:[%s472] sm:$0xf] %vm463, %v469
          %474 = vrot.lane.b32.xlu0 %v467, 112
          %v475 = vpop.permute.xlu0 %474
          %s477 = smul.addr %s33, 4
          %s478 = scalar_lea.vmem [#allocation4], %s477
          %479 = vst.msk [vmem:[%s478] sm:$0xf] %vm463, %v475
        $region52: #{tpu_custom_call.1} parent=47 // pred_fallthru
          _
        %s480 = smul.u32 %s32, 8
        %s481 = sshra.s32 %s480, 3
        %s482 = sand.u32 %s480, 7
        %s483 = sadd.s32 %s481, %s33
        %s484 = smul.addr %s483, 4
        %s485 = scalar_lea.vmem [#allocation2], %s484
        %v486 = vld [vmem:[%s485] sm:$0xf]
        %s487 = smul.addr %s33, 4
        %s488 = scalar_lea.vmem [#allocation3], %s487
        %v489 = vld [vmem:[%s488] sm:$0xf]
        %s490 = smul.addr %s33, 4
        %s491 = scalar_lea.vmem [#allocation4], %s490
        %v492 = vld [vmem:[%s491] sm:$0xf]
        %vm493 = vcmask 64512
        %v495 = vsel %vm493, %v486, 0
        %v498 = vsel %vm493, %v489, 0
        %500 = vmatprep.subr.bf16.mxu0 0
        %501 = vmatpush1.bf16.xpose.msra.mxu0 0
        %502 = vmatprep.subr.bf16.mxu0 0
        %503 = vmatpush1.bf16.xpose.msra.mxu0 0
        %504 = vmatprep.subr.bf16.mxu0 0
        %505 = vmatpush1.bf16.xpose.msra.mxu0 0
        %506 = vmatprep.subr.bf16.mxu0 0
        %507 = vmatpush1.bf16.xpose.msra.mxu0 0
        %508 = vmatprep.subr.bf16.mxu0 0
        %509 = vmatpush1.bf16.xpose.msra.mxu0 0
        %510 = vmatprep.subr.bf16.mxu0 0
        %511 = vmatpush1.bf16.xpose.msra.mxu0 0
        %512 = vmatprep.subr.bf16.mxu0 0
        %513 = vmatpush1.bf16.xpose.msra.mxu0 0
        %514 = vmatprep.subr.bf16.mxu0 0
        %515 = vmatpush1.bf16.xpose.msra.mxu0 %v498
        %516 = vmatprep.subr.bf16.mxu0 0
        %517 = vmatpush2.bf16.xpose.msra.mxu0 0
        %518 = vmatprep.subr.bf16.mxu0 0
        %519 = vmatpush2.bf16.xpose.msra.mxu0 0
        %520 = vmatprep.subr.bf16.mxu0 0
        %521 = vmatpush2.bf16.xpose.msra.mxu0 0
        %522 = vmatprep.subr.bf16.mxu0 0
        %523 = vmatpush2.bf16.xpose.msra.mxu0 0
        %524 = vmatprep.subr.bf16.mxu0 0
        %525 = vmatpush2.bf16.xpose.msra.mxu0 0
        %526 = vmatprep.subr.bf16.mxu0 0
        %527 = vmatpush2.bf16.xpose.msra.mxu0 0
        %528 = vmatprep.subr.bf16.mxu0 0
        %529 = vmatpush2.bf16.xpose.msra.mxu0 0
        %530 = vmatprep.subr.bf16.mxu0 0
        %531 = vmatpush2.bf16.xpose.msra.mxu0 0
        %532 = vmatprep.mubr.bf16.mxu0 0
        %533 = vmatmul.mubr.bf16.gmra.mxu0 %v495
        %v534 = vpop.f32.mrf.mxu0
        %v535 = vadd.f32 0.0, %v534
        %v536 = vpop.f32.mrf.mxu0
        %v537 = vpop.f32.mrf.mxu0
        %v538 = vpop.f32.mrf.mxu0
        %539 = vdwg.mxu0
        %v540 = vmul.f32 %v535, 0.35355338
        %v541 = vsub.f32 %v540, 2.9957323
        %v542 = vxor.u32 %v541, 2147483648
        %v543 = vmul.f32 %v542, 1.442695
        %v544 = vpow.pop %v543
        %v545 = vadd.f32 %v544, 1.0
        %v546 = vrcp.pop %v545
        %v547 = vmul.f32 1.0, %v546
        %v548 = vpack.c.bf16 %v547, %v547
        %vm549 = vcmask 60416
        %550 = vst.msk [vmem:[%s371] sm:$0xf] %vm549, %v548
        %v552 = vsel %vm493, %v548, 0
        %vm554 = vcmask 1043456
        %v556 = vsel %vm554, %v492, 0
        %558 = vmatprep.subr.bf16.mxu0 0
        %559 = vmatpush1.bf16.msra.mxu0 0
        %560 = vmatprep.subr.bf16.mxu0 0
        %561 = vmatpush1.bf16.msra.mxu0 0
        %562 = vmatprep.subr.bf16.mxu0 0
        %563 = vmatpush1.bf16.msra.mxu0 0
        %564 = vmatprep.subr.bf16.mxu0 0
        %565 = vmatpush1.bf16.msra.mxu0 0
        %566 = vmatprep.subr.bf16.mxu0 0
        %567 = vmatpush1.bf16.msra.mxu0 0
        %568 = vmatprep.subr.bf16.mxu0 0
        %569 = vmatpush1.bf16.msra.mxu0 0
        %570 = vmatprep.subr.bf16.mxu0 0
        %571 = vmatpush1.bf16.msra.mxu0 0
        %572 = vmatprep.subr.bf16.mxu0 0
        %573 = vmatpush1.bf16.msra.mxu0 %v556
        %574 = vmatprep.subr.bf16.mxu0 0
        %575 = vmatpush2.bf16.msra.mxu0 0
        %576 = vmatprep.subr.bf16.mxu0 0
        %577 = vmatpush2.bf16.msra.mxu0 0
        %578 = vmatprep.subr.bf16.mxu0 0
        %579 = vmatpush2.bf16.msra.mxu0 0
        %580 = vmatprep.subr.bf16.mxu0 0
        %581 = vmatpush2.bf16.msra.mxu0 0
        %582 = vmatprep.subr.bf16.mxu0 0
        %583 = vmatpush2.bf16.msra.mxu0 0
        %584 = vmatprep.subr.bf16.mxu0 0
        %585 = vmatpush2.bf16.msra.mxu0 0
        %586 = vmatprep.subr.bf16.mxu0 0
        %587 = vmatpush2.bf16.msra.mxu0 0
        %588 = vmatprep.subr.bf16.mxu0 0
        %589 = vmatpush2.bf16.msra.mxu0 0
        %590 = vmatprep.mubr.bf16.mxu0 0
        %591 = vmatmul.mubr.bf16.gmra.mxu0 %v552
        %v592 = vpop.f32.mrf.mxu0
        %v593 = vadd.f32 0.0, %v592
        %v594 = vpop.f32.mrf.mxu0
        %v595 = vpop.f32.mrf.mxu0
        %v596 = vpop.f32.mrf.mxu0
        %597 = vdwg.mxu0
        %p598 = scmp.eq.s32.totalorder %s33, 0
        // Predicated region
        $region53: #{tpu_custom_call.1} parent=47 // pred_check
          %p599 = pneg %p598
        $region54: #{tpu_custom_call.1} parent=47 // pred_check_branch
          %601 = sbr.rel (%p599) target = $region56
        $region55: #{tpu_custom_call.1} parent=47 // pred_region
          %vm602 = vcmask 261120
          %603 = vst.msk [vmem:[#allocation5] sm:$0xff] %vm602, 0.0
        $region56: #{tpu_custom_call.1} parent=47 // pred_fallthru
          _
        %v604 = vld [vmem:[#allocation5] sm:$0xff]
        %v605 = vpack.c.bf16 %v593, %v593
        %v606 = vld [vmem:[%s387] sm:$0xf]
        %v608 = vsel %vm493, %v605, 0
        %v611 = vsel %vm554, %v606, 0
        %613 = vmatprep.subr.bf16.mxu0 0
        %614 = vmatpush1.bf16.msra.mxu0 0
        %615 = vmatprep.subr.bf16.mxu0 0
        %616 = vmatpush1.bf16.msra.mxu0 0
        %617 = vmatprep.subr.bf16.mxu0 0
        %618 = vmatpush1.bf16.msra.mxu0 0
        %619 = vmatprep.subr.bf16.mxu0 0
        %620 = vmatpush1.bf16.msra.mxu0 0
        %621 = vmatprep.subr.bf16.mxu0 0
        %622 = vmatpush1.bf16.msra.mxu0 0
        %623 = vmatprep.subr.bf16.mxu0 0
        %624 = vmatpush1.bf16.msra.mxu0 0
        %625 = vmatprep.subr.bf16.mxu0 0
        %626 = vmatpush1.bf16.msra.mxu0 0
        %627 = vmatprep.subr.bf16.mxu0 0
        %628 = vmatpush1.bf16.msra.mxu0 %v611
        %629 = vmatprep.subr.bf16.mxu0 0
        %630 = vmatpush2.bf16.msra.mxu0 0
        %631 = vmatprep.subr.bf16.mxu0 0
        %632 = vmatpush2.bf16.msra.mxu0 0
        %633 = vmatprep.subr.bf16.mxu0 0
        %634 = vmatpush2.bf16.msra.mxu0 0
        %635 = vmatprep.subr.bf16.mxu0 0
        %636 = vmatpush2.bf16.msra.mxu0 0
        %637 = vmatprep.subr.bf16.mxu0 0
        %638 = vmatpush2.bf16.msra.mxu0 0
        %639 = vmatprep.subr.bf16.mxu0 0
        %640 = vmatpush2.bf16.msra.mxu0 0
        %641 = vmatprep.subr.bf16.mxu0 0
        %642 = vmatpush2.bf16.msra.mxu0 0
        %643 = vmatprep.subr.bf16.mxu0 0
        %644 = vmatpush2.bf16.msra.mxu0 0
        %645 = vmatprep.mubr.bf16.mxu0 0
        %646 = vmatmul.mubr.bf16.gmra.mxu0 %v608
        %v647 = vpop.f32.mrf.mxu0
        %v648 = vadd.f32 0.0, %v647
        %v649 = vpop.f32.mrf.mxu0
        %v650 = vpop.f32.mrf.mxu0
        %v651 = vpop.f32.mrf.mxu0
        %652 = vdwg.mxu0
        %v653 = vadd.f32 %v604, %v648
        %vm654 = vcmask 261120
        %655 = vst.msk [vmem:[#allocation5] sm:$0xff] %vm654, %v653
        %p656 = scmp.eq.s32.totalorder %s33, 3
        // Predicated region
        $region57: #{tpu_custom_call.1} parent=47 // pred_check
          %p657 = pneg %p656
        $region58: #{tpu_custom_call.1} parent=47 // pred_check_branch
          %659 = sbr.rel (%p657) target = $region60
        $region59: #{tpu_custom_call.1} parent=47 // pred_region
          %v660 = vld [vmem:[#allocation5] sm:$0xff]
          %v661 = vld [vmem:[%s4] sm:$0x1]
          %v662 = vunpack.c.l.bf16 %v661
          %v663 = vlaneseq
          %v664 = vshrl.u32 %v663, 7
          %v665 = vsub.s32 0, %v664
          %v666 = vrot.slane %v662, %v665
          %v667 = vadd.f32 %v660, %v666
          %v668 = vpack.c.bf16 %v667, %v667
          %v669 = vld [vmem:[%s5] sm:$0xf]
          %v670 = vld [vmem:[%s5 + $0x4] sm:$0xf]
          %v671 = vld [vmem:[%s5 + $0x8] sm:$0xf]
          %v672 = vld [vmem:[%s5 + $0xc] sm:$0xf]
          %v673 = vld [vmem:[%s6] sm:$0x1]
          %v674 = vunpack.c.l.bf16 %v673
          %v675 = vlaneseq
          %v676 = vshrl.u32 %v675, 7
          %v677 = vsub.s32 0, %v676
          %v678 = vrot.slane %v674, %v677
          %v683 = vunpack.c.l.b16 %v669
          %v684 = vunpack.c.l.b16 %v670
          %v685 = vunpack.c.l.b16 %v671
          %v686 = vunpack.c.l.b16 %v672
          %v687 = vpack.c.b16 %v684, %v683
          %v688 = vpack.c.b16 %v686, %v685
          %v692 = vsel %vm654, %v668, 0
          %694 = vmatprep.subr.bf16.mxu0 0
          %695 = vmatpush1.bf16.msra.mxu0 0
          %696 = vmatprep.subr.bf16.mxu0 0
          %697 = vmatpush1.bf16.msra.mxu0 0
          %698 = vmatprep.subr.bf16.mxu0 0
          %699 = vmatpush1.bf16.msra.mxu0 0
          %700 = vmatprep.subr.bf16.mxu0 0
          %701 = vmatpush1.bf16.msra.mxu0 0
          %702 = vmatprep.subr.bf16.mxu0 0
          %703 = vmatpush1.bf16.msra.mxu0 0
          %704 = vmatprep.subr.bf16.mxu0 0
          %705 = vmatpush1.bf16.msra.mxu0 0
          %706 = vmatprep.subr.bf16.mxu0 0
          %707 = vmatpush1.bf16.msra.mxu0 %v688
          %708 = vmatprep.subr.bf16.mxu0 0
          %709 = vmatpush1.bf16.msra.mxu0 %v687
          %710 = vmatprep.subr.bf16.mxu0 0
          %711 = vmatpush2.bf16.msra.mxu0 0
          %712 = vmatprep.subr.bf16.mxu0 0
          %713 = vmatpush2.bf16.msra.mxu0 0
          %714 = vmatprep.subr.bf16.mxu0 0
          %715 = vmatpush2.bf16.msra.mxu0 0
          %716 = vmatprep.subr.bf16.mxu0 0
          %717 = vmatpush2.bf16.msra.mxu0 0
          %718 = vmatprep.subr.bf16.mxu0 0
          %719 = vmatpush2.bf16.msra.mxu0 0
          %720 = vmatprep.subr.bf16.mxu0 0
          %721 = vmatpush2.bf16.msra.mxu0 0
          %722 = vmatprep.subr.bf16.mxu0 0
          %723 = vmatpush2.bf16.msra.mxu0 0
          %724 = vmatprep.subr.bf16.mxu0 0
          %725 = vmatpush2.bf16.msra.mxu0 0
          %726 = vmatprep.mubr.bf16.mxu0 0
          %727 = vmatmul.mubr.bf16.gmra.mxu0 %v692
          %v728 = vpop.f32.mrf.mxu0
          %v729 = vadd.f32 %v678, %v728
          %v730 = vpop.f32.mrf.mxu0
          %v731 = vpop.f32.mrf.mxu0
          %v732 = vpop.f32.mrf.mxu0
          %733 = vdwg.mxu0
          %v734 = vmax.f32 %v729, 0.0
          %735 = vst.msk [vmem:[%s364] sm:$0xff] %vm654, %v734
        $region60: #{tpu_custom_call.1} parent=47 // pred_fallthru
          _
        %s736 = sand.u32 %s222, 1
        %s737 = scalar_lea.sflag [#allocation7], %s736
        %s738 = sand.u32 %s222, 1
        %s739 = smul.addr %s738, 8
        %s740 = scalar_lea.vmem [#allocation6], %s739
        %s741 = sand.u32 %s252, 1
        %s742 = scalar_lea.sflag [#allocation9], %s741
        %s743 = sand.u32 %s252, 1
        %s744 = smul.addr %s743, 4
        %s745 = scalar_lea.vmem [#allocation8], %s744
        // Predicated region
        $region61: #{tpu_custom_call.1} parent=47 // pred_check
          %p746 = pneg %p232
        $region62: #{tpu_custom_call.1} parent=47 // pred_check_branch
          %748 = sbr.rel (%p746) target = $region64
        $region63: #{tpu_custom_call.1} parent=47 // pred_region
          %s750 = ssub.s32 128, 128
          %751 = vsyncadd %s737, %s750
          %s752 = sadd.s32 %s32, %s31
          %s753 = smul.addr %s752, 128
          %s754 = scalar_lea.hbm %s7, %s753
          %s756 = sshll.u32 %s740, 4
          %s757 = int_to_ptr.vmem [resolvable:$true] %s756
          %759 = dma.vmem_to_hbm [thread:$0]  %s757, 128, %s754, %s737
        $region64: #{tpu_custom_call.1} parent=47 // pred_fallthru
          _
        // Predicated region
        $region65: #{tpu_custom_call.1} parent=47 // pred_check
          %p760 = pneg %p262
        $region66: #{tpu_custom_call.1} parent=47 // pred_check_branch
          %762 = sbr.rel (%p760) target = $region68
        $region67: #{tpu_custom_call.1} parent=47 // pred_region
          %s764 = ssub.s32 64, 64
          %765 = vsyncadd %s742, %s764
          %s766 = sadd.s32 %s32, %s33
          %s767 = smul.addr %s31, 4
          %s768 = sadd.s32 %s766, %s767
          %s769 = smul.addr %s768, 64
          %s770 = scalar_lea.hbm %s8, %s769
          %s772 = sshll.u32 %s745, 4
          %s773 = int_to_ptr.vmem [resolvable:$true] %s772
          %775 = dma.vmem_to_hbm [thread:$0]  %s773, 64, %s770, %s742
        $region68: #{tpu_custom_call.1} parent=47 // pred_fallthru
          _
      $region48: #{tpu_custom_call.1} parent=5 // pred_fallthru
        _
      %p776 = scmp.le.s32.totalorder 2, %s21
      // Predicated region
      $region69: #{tpu_custom_call.1} parent=5 // pred_check
        %p777 = pneg %p776
      $region70: #{tpu_custom_call.1} parent=5 // pred_check_branch
        %779 = sbr.rel (%p777) target = $region72
      $region71: #{tpu_custom_call.1} parent=5 // pred_region
        %s780 = ssub.s32 %s21, 2
        // Predicated region
        $region73: #{tpu_custom_call.1} parent=71 // pred_check
          %p781 = pneg %p238
        $region74: #{tpu_custom_call.1} parent=71 // pred_check_branch
          %783 = sbr.rel (%p781) target = $region76
        $region75: #{tpu_custom_call.1} parent=71 // pred_region
          %s784 = sand.u32 %s223, 1
          %s785 = scalar_lea.sflag [#allocation7], %s784
          %s786 = sand.u32 %s223, 1
          %s787 = smul.addr %s786, 8
          %s788 = scalar_lea.vmem [#allocation6], %s787
          %789 = dma.done %s785, 128
        $region76: #{tpu_custom_call.1} parent=71 // pred_fallthru
          _
        // Predicated region
        $region77: #{tpu_custom_call.1} parent=71 // pred_check
          %p790 = pneg %p268
        $region78: #{tpu_custom_call.1} parent=71 // pred_check_branch
          %792 = sbr.rel (%p790) target = $region80
        $region79: #{tpu_custom_call.1} parent=71 // pred_region
          %s793 = sand.u32 %s253, 1
          %s794 = scalar_lea.sflag [#allocation9], %s793
          %s795 = sand.u32 %s253, 1
          %s796 = smul.addr %s795, 4
          %s797 = scalar_lea.vmem [#allocation8], %s796
          %798 = dma.done %s794, 64
        $region80: #{tpu_custom_call.1} parent=71 // pred_fallthru
          _
      $region72: #{tpu_custom_call.1} parent=5 // pred_fallthru
        _
    $region6: #{tpu_custom_call.1} parent=1 // loop_footer
      %s25 = sadd.s32 1, %s21
    $region7: #{tpu_custom_call.1} parent=1 // loop_footer_branch
      %20 = sbr.rel target = $region3
    $region8: #{tpu_custom_call.1} parent=1 // loop_exit
      _
    %799 = vsyncpa [#allocation7], 1
    %s800 = scalar_lea.sflag [#allocation7], 1
    %801 = vsyncpa %s800, 1
    %802 = vsyncpa [#allocation9], 1
    %s803 = scalar_lea.sflag [#allocation9], 1
    %804 = vsyncpa %s803, 1

</llo_original>
